<compile_context>
chip_gen: v7x
topology: tpu7x:2x2x1
jax: 0.10.0
libtpu: 0.0.40
codegen_flags: <defaults>
</compile_context>

<pallas_src>
import jax
import jax.numpy as jnp
from jax.experimental import pallas as pl
from jax.experimental.pallas import tpu as pltpu


def mlp_kernel(p_ref, x_ref, o_ref):
    """One batch tile.

    p_ref : SMEM f32[17] = [0.5*W1 (6, row-major), 0.5*b1 (3),
                            0.5*W2 (6, row-major), b2 + 0.5*W2.sum(1) (2)]
    x_ref : VMEM f32[R, 128]; lanes interleave (feature0, feature1) per sample:
            row r, lanes 2i / 2i+1 hold the two features of sample 64*r + i.
    o_ref : VMEM f32[R, 128]; same interleaved layout for the two outputs.
    """
    xv = x_ref[...]                                        # (R, 128)

    # Even lanes hold feature 0 of their sample, odd lanes feature 1.
    lane = jax.lax.broadcasted_iota(jnp.int32, xv.shape, 1)
    is_even = (lane & 1) == 0

    # Deinterleave on the XLU: every lane gets BOTH features of its own sample.
    # (Circularly wrapped lanes are never selected: lane 0 is even, 127 is odd.)
    nxt = pltpu.roll(xv, shift=127, axis=1)                # value at lane l+1
    prv = pltpu.roll(xv, shift=1, axis=1)                  # value at lane l-1
    f0 = jnp.where(is_even, xv, prv)
    f1 = jnp.where(is_even, nxt, xv)

    # Layer 1 + sigmoid.  sigmoid(z) = 0.5*tanh(0.5*z) + 0.5; the 0.5's were
    # pre-folded into the SMEM params, so only the tanh (EUP) remains here.
    t0 = jnp.tanh(p_ref[0] * f0 + p_ref[1] * f1 + p_ref[6])
    t1 = jnp.tanh(p_ref[2] * f0 + p_ref[3] * f1 + p_ref[7])
    t2 = jnp.tanh(p_ref[4] * f0 + p_ref[5] * f1 + p_ref[8])

    # Layer 2 (the sigmoid's +0.5 offset is folded into bias terms p[15], p[16]).
    y0 = p_ref[9] * t0 + p_ref[10] * t1 + p_ref[11] * t2 + p_ref[15]
    y1 = p_ref[12] * t0 + p_ref[13] * t1 + p_ref[14] * t2 + p_ref[16]

    # Re-interleave and store a full, unmasked (R, 128) tile.
    o_ref[...] = jnp.where(is_even, y0, y1).astype(o_ref.dtype)


def _round_up(n, m):
    return (n + m - 1) // m * m


def mlp_forward(x, w1, b1, w2, b2, *, tb=262144):
    """Forward pass of Linear(2,3) -> Sigmoid -> Linear(3,2).

    x: (B, 2) float32.  Weights in PyTorch (out_features, in_features) layout.
    tb: samples per grid step, rounded to a multiple of 512 (8 sublanes x 64
        samples per 128-lane row).  Default 256Ki samples -> 2 MiB blocks,
        ~8 MiB of double-buffered VMEM (fits every generation's default budget).
    Returns (B, 2) float32.
    """
    B, F = x.shape
    assert F == 2, "MLP expects 2 input features"

    MIN_TB = 512  # 8 sublanes * 64 samples per 128-lane row
    # Cap the tile so small batches aren't grossly padded, and prefer >= 2 grid
    # steps so ("parallel",) can shard the batch across v7x's two TensorCores.
    half_b = _round_up(max((B + 1) // 2, 1), MIN_TB)
    tb = _round_up(min(max(tb, MIN_TB), half_b), MIN_TB)
    n_tiles = _round_up(B, tb) // tb
    B_pad = n_tiles * tb
    rows_per_tile = tb // 64           # multiple of 8 -> sublane aligned
    total_rows = B_pad // 64

    # Fold sigmoid(z) = 0.5*tanh(0.5*z) + 0.5 into the weights (exact algebra)
    # and pack everything into 17 SMEM scalars.
    w1h = 0.5 * w1.astype(jnp.float32)                    # (3, 2)
    b1h = 0.5 * b1.astype(jnp.float32)                    # (3,)
    w2h = 0.5 * w2.astype(jnp.float32)                    # (2, 3)
    b2h = b2.astype(jnp.float32) + jnp.sum(w2h, axis=1)   # (2,)
    params = jnp.concatenate(
        [w1h.reshape(-1), b1h, w2h.reshape(-1), b2h]).astype(jnp.float32)

    # Free row-major reshape: (B_pad, 2) -> (B_pad//64, 128); lanes interleave
    # (feature0, feature1).  Zero-padding only happens when B % tb != 0; the
    # padded tail samples run through the net and are discarded by the final
    # slice (keep it that way if batch reductions are ever added).
    xf = x.astype(jnp.float32)
    if B_pad != B:
        xf = jnp.pad(xf, ((0, B_pad - B), (0, 0)))
    x_rows = xf.reshape(total_rows, 128)

    o_rows = pl.pallas_call(
        mlp_kernel,
        out_shape=jax.ShapeDtypeStruct((total_rows, 128), jnp.float32),
        grid=(n_tiles,),
        in_specs=[
            pl.BlockSpec(memory_space=pltpu.MemorySpace.SMEM),       # 17 params
            pl.BlockSpec((rows_per_tile, 128), lambda i: (i, 0)),    # batch tile
        ],
        out_specs=pl.BlockSpec((rows_per_tile, 128), lambda i: (i, 0)),
        compiler_params=pltpu.CompilerParams(
            dimension_semantics=("parallel",),
        ),
    )(params, x_rows)

    out = o_rows.reshape(B_pad, 2)     # free reshape back to (B_pad, 2)
    return out if B_pad == B else out[:B]


def mlp_reference(x, w1, b1, w2, b2):
    h = jax.nn.sigmoid(
        jnp.dot(x, w1.T, precision=jax.lax.Precision.HIGHEST) + b1)
    return jnp.dot(h, w2.T, precision=jax.lax.Precision.HIGHEST) + b2


def init_params(key):
    # PyTorch default Linear init: uniform(-1/sqrt(fan_in), 1/sqrt(fan_in)).
    k1, k2, k3, k4 = jax.random.split(key, 4)
    bound1 = 1.0 / jnp.sqrt(2.0)
    bound2 = 1.0 / jnp.sqrt(3.0)
    w1 = jax.random.uniform(k1, (3, 2), jnp.float32, -bound1, bound1)
    b1 = jax.random.uniform(k2, (3,), jnp.float32, -bound1, bound1)
    w2 = jax.random.uniform(k3, (2, 3), jnp.float32, -bound2, bound2)
    b2 = jax.random.uniform(k4, (2,), jnp.float32, -bound2, bound2)
    return w1, b1, w2, b2


if __name__ == "__main__":
    key = jax.random.PRNGKey(0)
    kp, kx = jax.random.split(key)
    w1, b1, w2, b2 = init_params(kp)

    # Batch spanning two grid tiles (2 x 512 samples): exercises the grid, the
    # megacore-friendly >=2-tile split, and the unpadded path.
    x_big = jax.random.uniform(kx, (1024, 2), jnp.float32)
    out_big = jax.block_until_ready(mlp_forward(x_big, w1, b1, w2, b2))
    ref_big = mlp_reference(x_big, w1, b1, w2, b2)
    assert jnp.allclose(out_big, ref_big, atol=1e-4, rtol=1e-4), (out_big, ref_big)

    # Classic XOR truth table (B=4 -> padded up to one 512-sample tile).
    x_xor = jnp.array([[0.0, 0.0],
                       [0.0, 1.0],
                       [1.0, 0.0],
                       [1.0, 1.0]], dtype=jnp.float32)
    out_xor = jax.block_until_ready(mlp_forward(x_xor, w1, b1, w2, b2))
    ref_xor = mlp_reference(x_xor, w1, b1, w2, b2)
    assert jnp.allclose(out_xor, ref_xor, atol=1e-4, rtol=1e-4), (out_xor, ref_xor)

    print("KERNEL_OK")
</pallas_src>

<mosaic_0001>
module attributes {stable_mosaic.version = 11 : i64} {
  func.func @mlp_kernel(%arg0: i32, %arg1: memref<17xf32, #tpu.memory_space<smem>>, %arg2: memref<8x128xf32, #tpu.memory_space<vmem>>, %arg3: memref<8x128xf32, #tpu.memory_space<vmem>>) attributes {dimension_semantics = [#tpu.dimension_semantics<parallel>], iteration_bounds = array<i64: 2>, scalar_prefetch = 0 : i64, scratch_operands = 0 : i64, tpu.core_type = #tpu.core_type<tc>, window_params = [{transform_indices = @transform_0, window_bounds = array<i64: 17>}, {transform_indices = @transform_1, window_bounds = array<i64: 8, 128>}, {transform_indices = @transform_2, window_bounds = array<i64: 8, 128>}]} {
    %c0 = arith.constant 0 : index
    %c0_0 = arith.constant 0 : index
    %0 = vector.load %arg2[%c0, %c0_0] : memref<8x128xf32, #tpu.memory_space<vmem>>, vector<8x128xf32>
    %1 = tpu.iota {dimensions = array<i32: 1>} : vector<8x128xi32>
    %c1_i32 = arith.constant 1 : i32
    %2 = vector.broadcast %c1_i32 : i32 to vector<8x128xi32>
    %3 = arith.andi %1, %2 : vector<8x128xi32>
    %c0_i32 = arith.constant 0 : i32
    %4 = vector.broadcast %c0_i32 : i32 to vector<8x128xi32>
    %5 = arith.cmpi eq, %3, %4 : vector<8x128xi32>
    %c127_i32 = arith.constant 127 : i32
    %6 = tpu.dynamic_rotate %0 by %c127_i32 dim 1 : vector<8x128xf32>, i32 -> vector<8x128xf32>
    %c1_i32_1 = arith.constant 1 : i32
    %7 = tpu.dynamic_rotate %0 by %c1_i32_1 dim 1 : vector<8x128xf32>, i32 -> vector<8x128xf32>
    %8 = arith.select %5, %0, %7 : vector<8x128xi1>, vector<8x128xf32>
    %9 = arith.select %5, %6, %0 : vector<8x128xi1>, vector<8x128xf32>
    %c0_2 = arith.constant 0 : index
    %10 = memref.load %arg1[%c0_2] : memref<17xf32, #tpu.memory_space<smem>>
    %11 = vector.broadcast %10 : f32 to vector<8x128xf32>
    %12 = arith.mulf %11, %8 : vector<8x128xf32>
    %c1 = arith.constant 1 : index
    %13 = memref.load %arg1[%c1] : memref<17xf32, #tpu.memory_space<smem>>
    %14 = vector.broadcast %13 : f32 to vector<8x128xf32>
    %15 = arith.mulf %14, %9 : vector<8x128xf32>
    %16 = arith.addf %12, %15 : vector<8x128xf32>
    %c6 = arith.constant 6 : index
    %17 = memref.load %arg1[%c6] : memref<17xf32, #tpu.memory_space<smem>>
    %18 = vector.broadcast %17 : f32 to vector<8x128xf32>
    %19 = arith.addf %16, %18 : vector<8x128xf32>
    %20 = math.tanh %19 : vector<8x128xf32>
    %c2 = arith.constant 2 : index
    %21 = memref.load %arg1[%c2] : memref<17xf32, #tpu.memory_space<smem>>
    %22 = vector.broadcast %21 : f32 to vector<8x128xf32>
    %23 = arith.mulf %22, %8 : vector<8x128xf32>
    %c3 = arith.constant 3 : index
    %24 = memref.load %arg1[%c3] : memref<17xf32, #tpu.memory_space<smem>>
    %25 = vector.broadcast %24 : f32 to vector<8x128xf32>
    %26 = arith.mulf %25, %9 : vector<8x128xf32>
    %27 = arith.addf %23, %26 : vector<8x128xf32>
    %c7 = arith.constant 7 : index
    %28 = memref.load %arg1[%c7] : memref<17xf32, #tpu.memory_space<smem>>
    %29 = vector.broadcast %28 : f32 to vector<8x128xf32>
    %30 = arith.addf %27, %29 : vector<8x128xf32>
    %31 = math.tanh %30 : vector<8x128xf32>
    %c4 = arith.constant 4 : index
    %32 = memref.load %arg1[%c4] : memref<17xf32, #tpu.memory_space<smem>>
    %33 = vector.broadcast %32 : f32 to vector<8x128xf32>
    %34 = arith.mulf %33, %8 : vector<8x128xf32>
    %c5 = arith.constant 5 : index
    %35 = memref.load %arg1[%c5] : memref<17xf32, #tpu.memory_space<smem>>
    %36 = vector.broadcast %35 : f32 to vector<8x128xf32>
    %37 = arith.mulf %36, %9 : vector<8x128xf32>
    %38 = arith.addf %34, %37 : vector<8x128xf32>
    %c8 = arith.constant 8 : index
    %39 = memref.load %arg1[%c8] : memref<17xf32, #tpu.memory_space<smem>>
    %40 = vector.broadcast %39 : f32 to vector<8x128xf32>
    %41 = arith.addf %38, %40 : vector<8x128xf32>
    %42 = math.tanh %41 : vector<8x128xf32>
    %c9 = arith.constant 9 : index
    %43 = memref.load %arg1[%c9] : memref<17xf32, #tpu.memory_space<smem>>
    %44 = vector.broadcast %43 : f32 to vector<8x128xf32>
    %45 = arith.mulf %44, %20 : vector<8x128xf32>
    %c10 = arith.constant 10 : index
    %46 = memref.load %arg1[%c10] : memref<17xf32, #tpu.memory_space<smem>>
    %47 = vector.broadcast %46 : f32 to vector<8x128xf32>
    %48 = arith.mulf %47, %31 : vector<8x128xf32>
    %49 = arith.addf %45, %48 : vector<8x128xf32>
    %c11 = arith.constant 11 : index
    %50 = memref.load %arg1[%c11] : memref<17xf32, #tpu.memory_space<smem>>
    %51 = vector.broadcast %50 : f32 to vector<8x128xf32>
    %52 = arith.mulf %51, %42 : vector<8x128xf32>
    %53 = arith.addf %49, %52 : vector<8x128xf32>
    %c15 = arith.constant 15 : index
    %54 = memref.load %arg1[%c15] : memref<17xf32, #tpu.memory_space<smem>>
    %55 = vector.broadcast %54 : f32 to vector<8x128xf32>
    %56 = arith.addf %53, %55 : vector<8x128xf32>
    %c12 = arith.constant 12 : index
    %57 = memref.load %arg1[%c12] : memref<17xf32, #tpu.memory_space<smem>>
    %58 = vector.broadcast %57 : f32 to vector<8x128xf32>
    %59 = arith.mulf %58, %20 : vector<8x128xf32>
    %c13 = arith.constant 13 : index
    %60 = memref.load %arg1[%c13] : memref<17xf32, #tpu.memory_space<smem>>
    %61 = vector.broadcast %60 : f32 to vector<8x128xf32>
    %62 = arith.mulf %61, %31 : vector<8x128xf32>
    %63 = arith.addf %59, %62 : vector<8x128xf32>
    %c14 = arith.constant 14 : index
    %64 = memref.load %arg1[%c14] : memref<17xf32, #tpu.memory_space<smem>>
    %65 = vector.broadcast %64 : f32 to vector<8x128xf32>
    %66 = arith.mulf %65, %42 : vector<8x128xf32>
    %67 = arith.addf %63, %66 : vector<8x128xf32>
    %c16 = arith.constant 16 : index
    %68 = memref.load %arg1[%c16] : memref<17xf32, #tpu.memory_space<smem>>
    %69 = vector.broadcast %68 : f32 to vector<8x128xf32>
    %70 = arith.addf %67, %69 : vector<8x128xf32>
    %71 = arith.select %5, %56, %70 : vector<8x128xi1>, vector<8x128xf32>
    %c0_3 = arith.constant 0 : index
    %c0_4 = arith.constant 0 : index
    %72 = vector.load %arg3[%c0_3, %c0_4] : memref<8x128xf32, #tpu.memory_space<vmem>>, vector<8x128xf32>
    tpu.vector_store %arg3[%c0_3, %c0_4], %71 {strides = array<i32>} : memref<8x128xf32, #tpu.memory_space<vmem>>, vector<8x128xf32>,
    return
  }
  func.func @transform_0(%arg0: i32) -> i32 {
    %c0_i32 = arith.constant 0 : i32
    %c0_i32_0 = arith.constant 0 : i32
    return %c0_i32 : i32
  }
  func.func @transform_1(%arg0: i32) -> (i32, i32) {
    %c0_i32 = arith.constant 0 : i32
    %c0_i32_0 = arith.constant 0 : i32
    return %arg0, %c0_i32 : i32, i32
  }
  func.func @transform_2(%arg0: i32) -> (i32, i32) {
    %c0_i32 = arith.constant 0 : i32
    %c0_i32_0 = arith.constant 0 : i32
    return %arg0, %c0_i32 : i32, i32
  }
}

</mosaic_0001>

<llo_original>
// kernel: tpu_custom_call.1
$region0: #{tpu_custom_call.1}
  #allocation0 [shape = 'u32[]', space=smem, size = 0x4, offset = 0x4, fixed_abs, tag = 'smem constant byte address 0x4 - core index']
  #allocation1 [shape = 'u32[144,128]{1,0:T(1,128)}', space=vmem, size = 0x12000, scoped, tag = 'internal scratch']
  %s0 = inlined_call_operand.hbm [shape: f32[17], index: 0, kind: input, shape index: {}]
  %s1 = inlined_call_operand.hbm [shape: f32[16,128], index: 1, kind: input, shape index: {}]
  %s2 = inlined_call_operand.hbm [shape: f32[16,128], index: 2, kind: output, shape index: {}]
  %s3 = sld [smem:[#allocation0]]
  $region49: #{tpu_custom_call.1} parent=0
    _
  %s5 = ssub.s32 1, %s3
  %s6 = scalar_select 0, %s5, %s3
  $region1: #{tpu_custom_call.1} parent=0
    #allocation2 [shape = 'u8[512]{0}', space=smem, size = 0x200, scoped, tag = 'input window, operand 0, single buffered']
    #allocation3 [shape = 's32[2]{0}', space=sflag, size = 0x8, scoped, tag = 'scoped memory for tpu_custom_call.1']
    #allocation4 [shape = 's32[2]{0}', space=sflag, size = 0x8, scoped, tag = 'scoped memory for tpu_custom_call.1']
    #allocation5 [shape = 's32[2]{0}', space=sflag, size = 0x8, scoped, tag = 'scoped memory for tpu_custom_call.1']
    #allocation6 [shape = 'u8[8192]{0}', space=vmem, size = 0x2000, scoped, tag = 'input window, operand 1']
    #allocation7 [shape = 'u8[8192]{0}', space=vmem, size = 0x2000, scoped, tag = 'output window, operand 0']
    %7 = vsyncpa [#allocation5], 0
    %8 = vsyncpa [#allocation3], 0
    %s9 = scalar_lea.sflag [#allocation3], 1
    %10 = vsyncpa %s9, 0
    %11 = vsyncpa [#allocation4], 0
    %s12 = scalar_lea.sflag [#allocation4], 1
    %13 = vsyncpa %s12, 0
    loop: start=0, step=1, limit=4
    $region2: #{tpu_custom_call.1} parent=1 // loop_pre_header
      _
    $region3: #{tpu_custom_call.1} parent=1 // loop_header
      %s15 = sphi 0, %s19
      %p16 = scmp.ge.s32.totalorder %s15, 4
      %s23 = sphi 0, %s23
      %s25 = sphi 0, %s23
      %s26 = sphi 0, %s25
      %s40 = sphi 0, %s26
      %s46 = sphi 0, %s48
      %s49 = sphi 0, %s46
      %s50 = sphi 0, %s49
      %s66 = sphi 0, %s50
      %s72 = sphi 0, %s74
      %s75 = sphi 0, %s72
      %s76 = sphi 0, %s75
      %s92 = sphi 0, %s76
    $region4: #{tpu_custom_call.1} parent=1 // loop_header_branch
      %18 = sbr.rel (%p16) target = $region8
    $region5: #{tpu_custom_call.1} parent=1 // loop_body
      %s20 = ssub.s32 %s15, 1
      %s21 = ssub.s32 %s15, 2
      %s22 = sadd.s32 %s15, 1
      %s24 = sadd.s32 %s23, 1
      %p27 = scmp.eq.s32.totalorder %s15, 1
      %p28 = scmp.ne.s32.totalorder %s23, %s25
      %p29 = scmp.eq.s32.totalorder %s15, 0
      %p30 = por %p28, %p29
      %p31 = scmp.ne.s32.totalorder %s23, %s25
      %p32 = scmp.eq.s32.totalorder %s20, 1
      %p33 = por %p31, %p32
      %p34 = scmp.ne.s32.totalorder %s25, %s26
      %p35 = scmp.eq.s32.totalorder %s20, 0
      %p36 = por %p34, %p35
      %p37 = scmp.ne.s32.totalorder %s25, %s26
      %p38 = scmp.eq.s32.totalorder %s21, 1
      %p39 = por %p37, %p38
      %p41 = scmp.ne.s32.totalorder %s26, %s40
      %p42 = scmp.eq.s32.totalorder %s21, 0
      %p43 = por %p41, %p42
      %s44 = ssub.s32 %s15, %s22
      %p45 = scmp.eq.s32.totalorder %s44, 0
      %s47 = sadd.s32 %s46, 1
      %s48 = scalar_select %p45, %s46, %s47
      %p51 = pneg %p45
      %p52 = scmp.eq.s32.totalorder %s15, 1
      %p53 = por %p51, %p52
      %p54 = scmp.ne.s32.totalorder %s46, %s49
      %p55 = scmp.eq.s32.totalorder %s15, 0
      %p56 = por %p54, %p55
      %p57 = scmp.ne.s32.totalorder %s46, %s49
      %p58 = scmp.eq.s32.totalorder %s20, 1
      %p59 = por %p57, %p58
      %p60 = scmp.ne.s32.totalorder %s49, %s50
      %p61 = scmp.eq.s32.totalorder %s20, 0
      %p62 = por %p60, %p61
      %p63 = scmp.ne.s32.totalorder %s49, %s50
      %p64 = scmp.eq.s32.totalorder %s21, 1
      %p65 = por %p63, %p64
      %p67 = scmp.ne.s32.totalorder %s50, %s66
      %p68 = scmp.eq.s32.totalorder %s21, 0
      %p69 = por %p67, %p68
      %s70 = ssub.s32 %s15, %s22
      %p71 = scmp.eq.s32.totalorder %s70, 0
      %s73 = sadd.s32 %s72, 1
      %s74 = scalar_select %p71, %s72, %s73
      %p77 = pneg %p71
      %p78 = scmp.eq.s32.totalorder %s15, 1
      %p79 = por %p77, %p78
      %p80 = scmp.ne.s32.totalorder %s72, %s75
      %p81 = scmp.eq.s32.totalorder %s15, 0
      %p82 = por %p80, %p81
      %p83 = scmp.ne.s32.totalorder %s72, %s75
      %p84 = scmp.eq.s32.totalorder %s20, 1
      %p85 = por %p83, %p84
      %p86 = scmp.ne.s32.totalorder %s75, %s76
      %p87 = scmp.eq.s32.totalorder %s20, 0
      %p88 = por %p86, %p87
      %p89 = scmp.ne.s32.totalorder %s75, %s76
      %p90 = scmp.eq.s32.totalorder %s21, 1
      %p91 = por %p89, %p90
      %p93 = scmp.ne.s32.totalorder %s76, %s92
      %p94 = scmp.eq.s32.totalorder %s21, 0
      %p95 = por %p93, %p94
      %p96 = scmp.le.s32.totalorder 1, %s15
      %p97 = scmp.lt.s32.totalorder %s15, 3
      %p98 = pnand %p96, %p97
      %p99 = pneg %p98
      // Predicated region
      $region9: #{tpu_custom_call.1} parent=5 // pred_check
        _
      $region10: #{tpu_custom_call.1} parent=5 // pred_check_branch
        %101 = sbr.rel (%p98) target = $region12
      $region11: #{tpu_custom_call.1} parent=5 // pred_region
        %s102 = ssub.s32 %s15, 1
        // Predicated region
        $region13: #{tpu_custom_call.1} parent=11 // pred_check
          %p103 = pneg %p36
        $region14: #{tpu_custom_call.1} parent=11 // pred_check_branch
          %105 = sbr.rel (%p103) target = $region16
        $region15: #{tpu_custom_call.1} parent=11 // pred_region
          %s107 = ssub.s32 16, 16
          %108 = vsyncadd [#allocation5], %s107
          %111 = dma.hbm_to_smem %s0, 16, [#allocation2], [#allocation5]
        $region16: #{tpu_custom_call.1} parent=11 // pred_fallthru
          _
      $region12: #{tpu_custom_call.1} parent=5 // pred_fallthru
        _
      %p112 = scmp.lt.s32.totalorder %s15, 2
      // Predicated region
      $region17: #{tpu_custom_call.1} parent=5 // pred_check
        %p113 = pneg %p112
      $region18: #{tpu_custom_call.1} parent=5 // pred_check_branch
        %115 = sbr.rel (%p113) target = $region20
      $region19: #{tpu_custom_call.1} parent=5 // pred_region
        // Predicated region
        $region21: #{tpu_custom_call.1} parent=19 // pred_check
          %p116 = pneg %p56
        $region22: #{tpu_custom_call.1} parent=19 // pred_check_branch
          %118 = sbr.rel (%p116) target = $region24
        $region23: #{tpu_custom_call.1} parent=19 // pred_region
          %s119 = sand.u32 %s46, 1
          %s120 = scalar_lea.sflag [#allocation3], %s119
          %s121 = sand.u32 %s46, 1
          %s122 = smul.addr %s121, 8
          %s123 = scalar_lea.vmem [#allocation6], %s122
          %s125 = ssub.s32 128, 128
          %126 = vsyncadd %s120, %s125
          %s127 = smul.addr %s15, 128
          %s128 = scalar_lea.hbm %s1, %s127
          %s130 = sshll.u32 %s123, 4
          %s131 = int_to_ptr.vmem [resolvable:$true] %s130
          %133 = dma.hbm_to_vmem [thread:$0]  %s128, 128, %s131, %s120
        $region24: #{tpu_custom_call.1} parent=19 // pred_fallthru
          _
      $region20: #{tpu_custom_call.1} parent=5 // pred_fallthru
        _
      %p134 = scmp.le.s32.totalorder 1, %s15
      %p135 = scmp.lt.s32.totalorder %s15, 3
      %p136 = pnand %p134, %p135
      %p137 = pneg %p136
      // Predicated region
      $region25: #{tpu_custom_call.1} parent=5 // pred_check
        _
      $region26: #{tpu_custom_call.1} parent=5 // pred_check_branch
        %139 = sbr.rel (%p136) target = $region28
      $region27: #{tpu_custom_call.1} parent=5 // pred_region
        %s140 = ssub.s32 %s15, 1
        // Predicated region
        $region29: #{tpu_custom_call.1} parent=27 // pred_check
          %p141 = pneg %p36
        $region30: #{tpu_custom_call.1} parent=27 // pred_check_branch
          %143 = sbr.rel (%p141) target = $region32
        $region31: #{tpu_custom_call.1} parent=27 // pred_region
          %144 = dma.done [#allocation5], 16
        $region32: #{tpu_custom_call.1} parent=27 // pred_fallthru
          _
        %s145 = sand.u32 %s49, 1
        %s146 = scalar_lea.sflag [#allocation3], %s145
        %s147 = sand.u32 %s49, 1
        %s148 = smul.addr %s147, 8
        %s149 = scalar_lea.vmem [#allocation6], %s148
        // Predicated region
        $region33: #{tpu_custom_call.1} parent=27 // pred_check
          %p150 = pneg %p62
        $region34: #{tpu_custom_call.1} parent=27 // pred_check_branch
          %152 = sbr.rel (%p150) target = $region36
        $region35: #{tpu_custom_call.1} parent=27 // pred_region
          %153 = dma.done %s146, 128
        $region36: #{tpu_custom_call.1} parent=27 // pred_fallthru
          _
        %154 = sfence
        %p155 = pneg %p36
        %p156 = pneg %p33
        %s157 = sand.u32 %s49, 1
        %s158 = scalar_lea.sflag [#allocation3], %s157
        %s159 = sand.u32 %s49, 1
        %s160 = smul.addr %s159, 8
        %s161 = scalar_lea.vmem [#allocation6], %s160
        %p162 = pneg %p62
        %p163 = pneg %p59
        %p164 = pneg %p88
        %p165 = pneg %p85
        %s166 = sand.u32 %s75, 1
        %s167 = scalar_lea.sflag [#allocation4], %s166
        %s168 = sand.u32 %s75, 1
        %s169 = smul.addr %s168, 8
        %s170 = scalar_lea.vmem [#allocation7], %s169
        %v171 = vld [vmem:[%s149] sm:$0xff]
        %v172 = vlaneseq
        %v173 = vand.u32 %v172, 127
        %v174 = vand.u32 %v173, 1
        %vm175 = vcmp.eq.s32.totalorder %v174, 0
        %176 = vrot.lane.b32.xlu0 %v171, 127
        %v177 = vpop.permute.xlu0 %176
        %178 = vrot.lane.b32.xlu0 %v171, 1
        %v179 = vpop.permute.xlu0 %178
        %v180 = vsel %vm175, %v171, %v179
        %v181 = vsel %vm175, %v177, %v171
        %s182 = sld [smem:[#allocation2]]
        %v183 = vstv %s182
        %v184 = vmul.f32 %v183, %v180
        %s185 = sld [smem:[#allocation2 + $0x1]]
        %v186 = vstv %s185
        %v187 = vmul.f32 %v186, %v181
        %v188 = vadd.f32 %v184, %v187
        %s189 = sld [smem:[#allocation2 + $0x6]]
        %v190 = vstv %s189
        %v191 = vadd.f32 %v188, %v190
        %v192 = vtanh.pop %v191
        %s193 = sld [smem:[#allocation2 + $0x2]]
        %v194 = vstv %s193
        %v195 = vmul.f32 %v194, %v180
        %s196 = sld [smem:[#allocation2 + $0x3]]
        %v197 = vstv %s196
        %v198 = vmul.f32 %v197, %v181
        %v199 = vadd.f32 %v195, %v198
        %s200 = sld [smem:[#allocation2 + $0x7]]
        %v201 = vstv %s200
        %v202 = vadd.f32 %v199, %v201
        %v203 = vtanh.pop %v202
        %s204 = sld [smem:[#allocation2 + $0x4]]
        %v205 = vstv %s204
        %v206 = vmul.f32 %v205, %v180
        %s207 = sld [smem:[#allocation2 + $0x5]]
        %v208 = vstv %s207
        %v209 = vmul.f32 %v208, %v181
        %v210 = vadd.f32 %v206, %v209
        %s211 = sld [smem:[#allocation2 + $0x8]]
        %v212 = vstv %s211
        %v213 = vadd.f32 %v210, %v212
        %v214 = vtanh.pop %v213
        %s215 = sld [smem:[#allocation2 + $0x9]]
        %v216 = vstv %s215
        %v217 = vmul.f32 %v216, %v192
        %s218 = sld [smem:[#allocation2 + $0xa]]
        %v219 = vstv %s218
        %v220 = vmul.f32 %v219, %v203
        %v221 = vadd.f32 %v217, %v220
        %s222 = sld [smem:[#allocation2 + $0xb]]
        %v223 = vstv %s222
        %v224 = vmul.f32 %v223, %v214
        %v225 = vadd.f32 %v221, %v224
        %s226 = sld [smem:[#allocation2 + $0xf]]
        %v227 = vstv %s226
        %v228 = vadd.f32 %v225, %v227
        %s229 = sld [smem:[#allocation2 + $0xc]]
        %v230 = vstv %s229
        %v231 = vmul.f32 %v230, %v192
        %s232 = sld [smem:[#allocation2 + $0xd]]
        %v233 = vstv %s232
        %v234 = vmul.f32 %v233, %v203
        %v235 = vadd.f32 %v231, %v234
        %s236 = sld [smem:[#allocation2 + $0xe]]
        %v237 = vstv %s236
        %v238 = vmul.f32 %v237, %v214
        %v239 = vadd.f32 %v235, %v238
        %s240 = sld [smem:[#allocation2 + $0x10]]
        %v241 = vstv %s240
        %v242 = vadd.f32 %v239, %v241
        %v243 = vsel %vm175, %v228, %v242
        %244 = vst [vmem:[%s170] sm:$0xff] %v243
        %s245 = sand.u32 %s75, 1
        %s246 = scalar_lea.sflag [#allocation4], %s245
        %s247 = sand.u32 %s75, 1
        %s248 = smul.addr %s247, 8
        %s249 = scalar_lea.vmem [#allocation7], %s248
        // Predicated region
        $region37: #{tpu_custom_call.1} parent=27 // pred_check
          %p250 = pneg %p85
        $region38: #{tpu_custom_call.1} parent=27 // pred_check_branch
          %252 = sbr.rel (%p250) target = $region40
        $region39: #{tpu_custom_call.1} parent=27 // pred_region
          %s254 = ssub.s32 128, 128
          %255 = vsyncadd %s246, %s254
          %s256 = smul.addr %s20, 128
          %s257 = scalar_lea.hbm %s2, %s256
          %s259 = sshll.u32 %s249, 4
          %s260 = int_to_ptr.vmem [resolvable:$true] %s259
          %262 = dma.vmem_to_hbm [thread:$0]  %s260, 128, %s257, %s246
        $region40: #{tpu_custom_call.1} parent=27 // pred_fallthru
          _
      $region28: #{tpu_custom_call.1} parent=5 // pred_fallthru
        _
      %p263 = scmp.le.s32.totalorder 2, %s15
      // Predicated region
      $region41: #{tpu_custom_call.1} parent=5 // pred_check
        %p264 = pneg %p263
      $region42: #{tpu_custom_call.1} parent=5 // pred_check_branch
        %266 = sbr.rel (%p264) target = $region44
      $region43: #{tpu_custom_call.1} parent=5 // pred_region
        %s267 = ssub.s32 %s15, 2
        // Predicated region
        $region45: #{tpu_custom_call.1} parent=43 // pred_check
          %p268 = pneg %p91
        $region46: #{tpu_custom_call.1} parent=43 // pred_check_branch
          %270 = sbr.rel (%p268) target = $region48
        $region47: #{tpu_custom_call.1} parent=43 // pred_region
          %s271 = sand.u32 %s76, 1
          %s272 = scalar_lea.sflag [#allocation4], %s271
          %s273 = sand.u32 %s76, 1
          %s274 = smul.addr %s273, 8
          %s275 = scalar_lea.vmem [#allocation7], %s274
          %276 = dma.done %s272, 128
        $region48: #{tpu_custom_call.1} parent=43 // pred_fallthru
          _
      $region44: #{tpu_custom_call.1} parent=5 // pred_fallthru
        _
    $region6: #{tpu_custom_call.1} parent=1 // loop_footer
      %s19 = sadd.s32 1, %s15
    $region7: #{tpu_custom_call.1} parent=1 // loop_footer_branch
      %14 = sbr.rel target = $region3
    $region8: #{tpu_custom_call.1} parent=1 // loop_exit
      _
    %277 = vsyncpa [#allocation3], 1
    %s278 = scalar_lea.sflag [#allocation3], 1
    %279 = vsyncpa %s278, 1
    %280 = vsyncpa [#allocation4], 1
    %s281 = scalar_lea.sflag [#allocation4], 1
    %282 = vsyncpa %s281, 1
    %283 = vsyncpa [#allocation5], 1
    %s284 = scalar_lea.sflag [#allocation5], 1
    %285 = vsyncpa %s284, 1

</llo_original>
